<compile_context>
chip_gen: v7x
topology: tpu7x:2x2x1
jax: 0.10.0
libtpu: 0.0.40
codegen_flags: <defaults>
</compile_context>

<pallas_src>
import jax
import jax.numpy as jnp
from jax.experimental import pallas as pl
from jax.experimental.pallas import tpu as pltpu


def _round_up(x: int, m: int) -> int:
    return ((x + m - 1) // m) * m


def _critic_kernel(x_ref, w1_ref, b1_ref, w2_ref, b2_ref, w3_ref, b3_ref, o_ref):
    # Layer 1: [TB, Din] @ [Din, H] (MXU, f32 accumulate) + bias, ReLU in f32.
    h1 = jnp.dot(x_ref[...], w1_ref[...], preferred_element_type=jnp.float32)
    h1 = jnp.maximum(h1 + b1_ref[...], 0.0)

    # Layer 2: [TB, H] @ [H, H] (MXU, f32 accumulate) + bias, ReLU in f32.
    h1 = h1.astype(w2_ref.dtype)  # feed the MXU in the weight dtype (bf16 or f32)
    h2 = jnp.dot(h1, w2_ref[...], preferred_element_type=jnp.float32)
    h2 = jnp.maximum(h2 + b2_ref[...], 0.0)

    # Layer 3 (out_features = 1): keep it off the MXU. VPU multiply with the
    # [1, H] w3 row + lane reduction (XLU slot), then add the SMEM scalar bias.
    v = jnp.sum(h2 * w3_ref[...], axis=-1, keepdims=True) + b3_ref[0, 0]
    o_ref[...] = v.astype(o_ref.dtype)


def critic_head_forward(features, w1, b1, w2, b2, w3, b3,
                        *, block_b: int = 512, matmul_dtype=jnp.bfloat16):
    """features: [B, D_in] float32 -> value [B, 1] float32.

    block_b:      batch tile size (rows per grid step); swept 256/512 is a good range.
    matmul_dtype: dtype fed to the MXU for x/w1/w2 (f32 accumulation). Use None
                  (or jnp.float32) for bit-faithful f32 matmuls.
    """
    B, Din = features.shape
    H = w1.shape[1]
    out_dtype = features.dtype

    # Batch tile: multiple of 8 sublanes, capped at block_b; pad B up to a tile multiple.
    tb = min(_round_up(B, 8), _round_up(block_b, 8))
    b_pad = _round_up(B, tb)
    if b_pad != B:
        features = jnp.pad(features, ((0, b_pad - B), (0, 0)))
    num_blocks = b_pad // tb

    # Kernel-side parameter layout.
    b1_r = b1.reshape(1, H).astype(jnp.float32)
    b2_r = b2.reshape(1, H).astype(jnp.float32)
    w3_row = w3.reshape(1, H).astype(jnp.float32)   # [H,1] -> [1,H] lane row
    b3_s = b3.reshape(1, 1).astype(jnp.float32)     # SMEM scalar

    if matmul_dtype is not None and matmul_dtype != jnp.float32:
        x_in = features.astype(matmul_dtype)
        w1_in = w1.astype(matmul_dtype)
        w2_in = w2.astype(matmul_dtype)
    else:
        x_in, w1_in, w2_in = features, w1, w2

    itemsize = jnp.dtype(x_in.dtype).itemsize
    bytes_accessed = (
        b_pad * Din * itemsize                       # streamed features
        + (Din * H + H * H) * itemsize               # resident matmul weights
        + (2 * H + H + 1) * 4                        # biases + w3 row (f32)
        + b_pad * 4                                  # output column
    )
    cost = pl.CostEstimate(
        flops=2 * b_pad * (Din * H + H * H + H),
        transcendentals=0,
        bytes_accessed=bytes_accessed,
    )

    out = pl.pallas_call(
        _critic_kernel,
        out_shape=jax.ShapeDtypeStruct((b_pad, 1), out_dtype),
        grid=(num_blocks,),
        in_specs=[
            pl.BlockSpec((tb, Din), lambda i: (i, 0)),              # x: streamed per tile
            pl.BlockSpec((Din, H), lambda i: (0, 0)),               # w1: resident
            pl.BlockSpec((1, H), lambda i: (0, 0)),                 # b1: resident
            pl.BlockSpec((H, H), lambda i: (0, 0)),                 # w2: resident
            pl.BlockSpec((1, H), lambda i: (0, 0)),                 # b2: resident
            pl.BlockSpec((1, H), lambda i: (0, 0)),                 # w3 row: resident
            pl.BlockSpec(memory_space=pltpu.MemorySpace.SMEM),      # b3 scalar
        ],
        out_specs=pl.BlockSpec((tb, 1), lambda i: (i, 0)),
        compiler_params=pltpu.CompilerParams(
            dimension_semantics=("parallel",),                      # shard batch across TCs (v7x)
        ),
        cost_estimate=cost,
    )(x_in, w1_in, b1_r, w2_in, b2_r, w3_row, b3_s)

    return out[:B]


def init_critic_params(key, input_dim, hidden_dim):
    """Deterministic init mimicking nn.Linear's U(-1/sqrt(fan_in), 1/sqrt(fan_in))."""
    ks = jax.random.split(key, 6)

    def linear(kw, kb, fan_in, fan_out):
        bound = 1.0 / jnp.sqrt(jnp.float32(fan_in))
        w = jax.random.uniform(kw, (fan_in, fan_out), jnp.float32, -bound, bound)
        b = jax.random.uniform(kb, (1, fan_out), jnp.float32, -bound, bound)
        return w, b

    w1, b1 = linear(ks[0], ks[1], input_dim, hidden_dim)
    w2, b2 = linear(ks[2], ks[3], hidden_dim, hidden_dim)
    w3, b3 = linear(ks[4], ks[5], hidden_dim, 1)
    return w1, b1, w2, b2, w3, b3


def critic_head_reference(features, w1, b1, w2, b2, w3, b3):
    """Pure-JAX f32 reference of the PyTorch forward."""
    h1 = jnp.maximum(features @ w1 + b1, 0.0)
    h2 = jnp.maximum(h1 @ w2 + b2, 0.0)
    return h2 @ w3 + b3


if __name__ == "__main__":
    key = jax.random.PRNGKey(0)
    k_feat, k_params = jax.random.split(key)

    # Small shapes consistent with the module: features [batch, input_dim].
    batch, input_dim, hidden_dim = 8, 32, 128

    features = jax.random.normal(k_feat, (batch, input_dim), jnp.float32)
    params = init_critic_params(k_params, input_dim, hidden_dim)

    ref = critic_head_reference(features, *params)

    # Exact-precision path (f32 MXU inputs): must match the f32 reference tightly.
    value_f32 = critic_head_forward(features, *params, matmul_dtype=None)
    value_f32 = jax.block_until_ready(value_f32)
    assert value_f32.shape == (batch, 1), value_f32.shape
    assert jnp.allclose(value_f32, ref, atol=1e-4, rtol=1e-4), (
        "Pallas kernel (f32) does not match reference"
    )

    # Default performance path (bf16 MXU inputs, f32 accumulate): looser tolerance.
    value_bf16 = critic_head_forward(features, *params)
    value_bf16 = jax.block_until_ready(value_bf16)
    assert value_bf16.shape == (batch, 1), value_bf16.shape
    assert jnp.allclose(value_bf16, ref, atol=5e-2, rtol=5e-2), (
        "Pallas kernel (bf16 matmul) diverges too far from reference"
    )

    print("KERNEL_OK")
</pallas_src>

<mosaic_0001>
module attributes {stable_mosaic.version = 11 : i64} {
  func.func @_critic_kernel(%arg0: i32, %arg1: memref<8x32xf32, #tpu.memory_space<vmem>>, %arg2: memref<32x128xf32, #tpu.memory_space<vmem>>, %arg3: memref<1x128xf32, #tpu.memory_space<vmem>>, %arg4: memref<128x128xf32, #tpu.memory_space<vmem>>, %arg5: memref<1x128xf32, #tpu.memory_space<vmem>>, %arg6: memref<1x128xf32, #tpu.memory_space<vmem>>, %arg7: memref<1x1xf32, #tpu.memory_space<smem>>, %arg8: memref<8x1xf32, #tpu.memory_space<vmem>>) attributes {dimension_semantics = [#tpu.dimension_semantics<parallel>], iteration_bounds = array<i64: 1>, scalar_prefetch = 0 : i64, scratch_operands = 0 : i64, tpu.core_type = #tpu.core_type<tc>, window_params = [{transform_indices = @transform_0, window_bounds = array<i64: 8, 32>}, {pipeline_mode = #tpu.pipeline_mode<synchronous>, transform_indices = @transform_1, window_bounds = array<i64: 32, 128>}, {pipeline_mode = #tpu.pipeline_mode<synchronous>, transform_indices = @transform_2, window_bounds = array<i64: 1, 128>}, {pipeline_mode = #tpu.pipeline_mode<synchronous>, transform_indices = @transform_3, window_bounds = array<i64: 128, 128>}, {pipeline_mode = #tpu.pipeline_mode<synchronous>, transform_indices = @transform_4, window_bounds = array<i64: 1, 128>}, {pipeline_mode = #tpu.pipeline_mode<synchronous>, transform_indices = @transform_5, window_bounds = array<i64: 1, 128>}, {transform_indices = @transform_6, window_bounds = array<i64: 1, 1>}, {transform_indices = @transform_7, window_bounds = array<i64: 8, 1>}]} {
    %c0 = arith.constant 0 : index
    %c0_0 = arith.constant 0 : index
    %0 = vector.load %arg1[%c0, %c0_0] : memref<8x32xf32, #tpu.memory_space<vmem>>, vector<8x32xf32>
    %c0_1 = arith.constant 0 : index
    %c0_2 = arith.constant 0 : index
    %1 = vector.load %arg2[%c0_1, %c0_2] : memref<32x128xf32, #tpu.memory_space<vmem>>, vector<32x128xf32>
    %cst = arith.constant dense<0.000000e+00> : vector<8x128xf32>
    %2 = tpu.matmul %0, %1, %cst {dimension_numbers = #tpu.dot_dimension_numbers<[1], [0], [0], [1], [0, 0, 1, 1], [], []>} : vector<8x32xf32>, vector<32x128xf32>, vector<8x128xf32> -> vector<8x128xf32>
    %c0_3 = arith.constant 0 : index
    %c0_4 = arith.constant 0 : index
    %3 = vector.load %arg3[%c0_3, %c0_4] : memref<1x128xf32, #tpu.memory_space<vmem>>, vector<1x128xf32>
    %4 = vector.broadcast %3 : vector<1x128xf32> to vector<8x128xf32>
    %5 = arith.addf %2, %4 : vector<8x128xf32>
    %cst_5 = arith.constant 0.000000e+00 : f32
    %6 = vector.broadcast %cst_5 : f32 to vector<8x128xf32>
    %7 = arith.maximumf %5, %6 : vector<8x128xf32>
    %c0_6 = arith.constant 0 : index
    %c0_7 = arith.constant 0 : index
    %8 = vector.load %arg4[%c0_6, %c0_7] : memref<128x128xf32, #tpu.memory_space<vmem>>, vector<128x128xf32>
    %cst_8 = arith.constant dense<0.000000e+00> : vector<8x128xf32>
    %9 = tpu.matmul %7, %8, %cst_8 {dimension_numbers = #tpu.dot_dimension_numbers<[1], [0], [0], [1], [0, 0, 1, 1], [], []>} : vector<8x128xf32>, vector<128x128xf32>, vector<8x128xf32> -> vector<8x128xf32>
    %c0_9 = arith.constant 0 : index
    %c0_10 = arith.constant 0 : index
    %10 = vector.load %arg5[%c0_9, %c0_10] : memref<1x128xf32, #tpu.memory_space<vmem>>, vector<1x128xf32>
    %11 = vector.broadcast %10 : vector<1x128xf32> to vector<8x128xf32>
    %12 = arith.addf %9, %11 : vector<8x128xf32>
    %cst_11 = arith.constant 0.000000e+00 : f32
    %13 = vector.broadcast %cst_11 : f32 to vector<8x128xf32>
    %14 = arith.maximumf %12, %13 : vector<8x128xf32>
    %c0_12 = arith.constant 0 : index
    %c0_13 = arith.constant 0 : index
    %15 = vector.load %arg6[%c0_12, %c0_13] : memref<1x128xf32, #tpu.memory_space<vmem>>, vector<1x128xf32>
    %16 = vector.broadcast %15 : vector<1x128xf32> to vector<8x128xf32>
    %17 = arith.mulf %14, %16 : vector<8x128xf32>
    %cst_14 = arith.constant dense<0.000000e+00> : vector<8xf32>
    %18 = vector.multi_reduction <add>, %17, %cst_14 [1] : vector<8x128xf32> to vector<8xf32>
    %19 = vector.shape_cast %18 : vector<8xf32> to vector<8x1xf32>
    %c0_15 = arith.constant 0 : index
    %c0_16 = arith.constant 0 : index
    %20 = memref.load %arg7[%c0_15, %c0_16] : memref<1x1xf32, #tpu.memory_space<smem>>
    %21 = vector.broadcast %20 : f32 to vector<8x1xf32>
    %22 = arith.addf %19, %21 : vector<8x1xf32>
    %c0_17 = arith.constant 0 : index
    %c0_18 = arith.constant 0 : index
    %23 = vector.load %arg8[%c0_17, %c0_18] : memref<8x1xf32, #tpu.memory_space<vmem>>, vector<8x1xf32>
    tpu.vector_store %arg8[%c0_17, %c0_18], %22 {strides = array<i32>} : memref<8x1xf32, #tpu.memory_space<vmem>>, vector<8x1xf32>,
    return
  }
  func.func @transform_0(%arg0: i32) -> (i32, i32) {
    %c0_i32 = arith.constant 0 : i32
    %c0_i32_0 = arith.constant 0 : i32
    return %arg0, %c0_i32 : i32, i32
  }
  func.func @transform_1(%arg0: i32) -> (i32, i32) {
    %c0_i32 = arith.constant 0 : i32
    %c0_i32_0 = arith.constant 0 : i32
    %c0_i32_1 = arith.constant 0 : i32
    return %c0_i32, %c0_i32_0 : i32, i32
  }
  func.func @transform_2(%arg0: i32) -> (i32, i32) {
    %c0_i32 = arith.constant 0 : i32
    %c0_i32_0 = arith.constant 0 : i32
    %c0_i32_1 = arith.constant 0 : i32
    return %c0_i32, %c0_i32_0 : i32, i32
  }
  func.func @transform_3(%arg0: i32) -> (i32, i32) {
    %c0_i32 = arith.constant 0 : i32
    %c0_i32_0 = arith.constant 0 : i32
    %c0_i32_1 = arith.constant 0 : i32
    return %c0_i32, %c0_i32_0 : i32, i32
  }
  func.func @transform_4(%arg0: i32) -> (i32, i32) {
    %c0_i32 = arith.constant 0 : i32
    %c0_i32_0 = arith.constant 0 : i32
    %c0_i32_1 = arith.constant 0 : i32
    return %c0_i32, %c0_i32_0 : i32, i32
  }
  func.func @transform_5(%arg0: i32) -> (i32, i32) {
    %c0_i32 = arith.constant 0 : i32
    %c0_i32_0 = arith.constant 0 : i32
    %c0_i32_1 = arith.constant 0 : i32
    return %c0_i32, %c0_i32_0 : i32, i32
  }
  func.func @transform_6(%arg0: i32) -> (i32, i32) {
    %c0_i32 = arith.constant 0 : i32
    %c0_i32_0 = arith.constant 0 : i32
    %c0_i32_1 = arith.constant 0 : i32
    return %c0_i32, %c0_i32_0 : i32, i32
  }
  func.func @transform_7(%arg0: i32) -> (i32, i32) {
    %c0_i32 = arith.constant 0 : i32
    %c0_i32_0 = arith.constant 0 : i32
    return %arg0, %c0_i32 : i32, i32
  }
}

</mosaic_0001>

<llo_original>
// kernel: tpu_custom_call.1
$region0: #{tpu_custom_call.1}
  #allocation0 [shape = 'u32[]', space=smem, size = 0x4, offset = 0x4, fixed_abs, tag = 'smem constant byte address 0x4 - core index']
  #allocation1 [shape = 'u32[144,128]{1,0:T(1,128)}', space=vmem, size = 0x12000, scoped, tag = 'internal scratch']
  #allocation2 [shape = 'f32[1,1]{1,0:T(1,128)S(6)}', space=smem, size = 0x200, scoped, tag = 'scoped memory for tpu_custom_call.1']
  %s0 = inlined_call_operand.hbm [shape: f32[8,32], index: 0, kind: input, shape index: {}]
  %s1 = inlined_call_operand.hbm [shape: f32[32,128], index: 1, kind: input, shape index: {}]
  %s2 = inlined_call_operand.vmem [shape: f32[1,128], index: 2, kind: input, shape index: {}]
  %s3 = inlined_call_operand.hbm [shape: f32[128,128], index: 3, kind: input, shape index: {}]
  %s4 = inlined_call_operand.vmem [shape: f32[1,128], index: 4, kind: input, shape index: {}]
  %s5 = inlined_call_operand.vmem [shape: f32[1,128], index: 5, kind: input, shape index: {}]
  %s6 = inlined_call_operand.<no memory space> [shape: f32[1,1], index: 6, kind: input, shape index: {}]
  %s7 = inlined_call_operand.vmem [shape: f32[8,1], index: 7, kind: output, shape index: {}]
  %s8 = sld [smem:[#allocation0]]
  $region50: #{tpu_custom_call.1} parent=0
    _
  %s10 = ssub.s32 1, %s8
  %s11 = scalar_select 0, %s10, %s8
  %12 = sst [smem:[#allocation2]] %s6
  $region1: #{tpu_custom_call.1} parent=0
    #allocation3 [shape = 'u8[4096]{0}', space=vmem, size = 0x1000, scoped, tag = 'input window, operand 0, single buffered']
    #allocation4 [shape = 's32[1]{0}', space=sflag, size = 0x4, scoped, tag = 'scoped memory for tpu_custom_call.1']
    #allocation5 [shape = 'u8[16384]{0}', space=vmem, size = 0x4000, scoped, tag = 'input window, operand 1, single buffered']
    #allocation6 [shape = 's32[1]{0}', space=sflag, size = 0x4, scoped, tag = 'scoped memory for tpu_custom_call.1']
    #allocation7 [shape = 'u8[65536]{0}', space=vmem, size = 0x10000, scoped, tag = 'input window, operand 3, single buffered']
    %13 = vsyncpa [#allocation4], 0
    %14 = vsyncpa [#allocation6], 0
    // Predicated region
    $region2: #{tpu_custom_call.1} parent=1 // pred_check
      _
    $region3: #{tpu_custom_call.1} parent=1 // pred_check_branch
      %16 = sbr.rel (0) target = $region5
    $region4: #{tpu_custom_call.1} parent=1 // pred_region
      %s18 = ssub.s32 128, 128
      %19 = vsyncadd [#allocation4], %s18
      %s21 = sshll.u32 [#allocation3], 4
      %s22 = int_to_ptr.vmem [resolvable:$true] %s21
      %24 = dma.hbm_to_vmem [thread:$0]  %s0, 128, %s22, [#allocation4]
    $region5: #{tpu_custom_call.1} parent=1 // pred_fallthru
      _
    // Predicated region
    $region6: #{tpu_custom_call.1} parent=1 // pred_check
      _
    $region7: #{tpu_custom_call.1} parent=1 // pred_check_branch
      %26 = sbr.rel (0) target = $region9
    $region8: #{tpu_custom_call.1} parent=1 // pred_region
      %s28 = ssub.s32 512, 512
      %29 = vsyncadd [#allocation6], %s28
      %s30 = sshll.u32 [#allocation5], 4
      %s31 = int_to_ptr.vmem [resolvable:$true] %s30
      %36 = dma.hbm_to_vmem [thread:$0]  %s1, 512, %s31, [#allocation6], 128, 128, 8
    $region9: #{tpu_custom_call.1} parent=1 // pred_fallthru
      _
    // Predicated region
    $region10: #{tpu_custom_call.1} parent=1 // pred_check
      _
    $region11: #{tpu_custom_call.1} parent=1 // pred_check_branch
      %38 = sbr.rel (0) target = $region13
    $region12: #{tpu_custom_call.1} parent=1 // pred_region
      _
    $region13: #{tpu_custom_call.1} parent=1 // pred_fallthru
      _
    // Predicated region
    $region14: #{tpu_custom_call.1} parent=1 // pred_check
      _
    $region15: #{tpu_custom_call.1} parent=1 // pred_check_branch
      %40 = sbr.rel (0) target = $region17
    $region16: #{tpu_custom_call.1} parent=1 // pred_region
      %s42 = ssub.s32 2048, 2048
      %43 = vsyncadd [#allocation6], %s42
      %s44 = sshll.u32 [#allocation7], 4
      %s45 = int_to_ptr.vmem [resolvable:$true] %s44
      %50 = dma.hbm_to_vmem [thread:$0]  %s3, 2048, %s45, [#allocation6], 128, 128, 8
    $region17: #{tpu_custom_call.1} parent=1 // pred_fallthru
      _
    // Predicated region
    $region18: #{tpu_custom_call.1} parent=1 // pred_check
      _
    $region19: #{tpu_custom_call.1} parent=1 // pred_check_branch
      %52 = sbr.rel (0) target = $region21
    $region20: #{tpu_custom_call.1} parent=1 // pred_region
      _
    $region21: #{tpu_custom_call.1} parent=1 // pred_fallthru
      _
    // Predicated region
    $region22: #{tpu_custom_call.1} parent=1 // pred_check
      _
    $region23: #{tpu_custom_call.1} parent=1 // pred_check_branch
      %54 = sbr.rel (0) target = $region25
    $region24: #{tpu_custom_call.1} parent=1 // pred_region
      _
    $region25: #{tpu_custom_call.1} parent=1 // pred_fallthru
      _
    // Predicated region
    $region26: #{tpu_custom_call.1} parent=1 // pred_check
      _
    $region27: #{tpu_custom_call.1} parent=1 // pred_check_branch
      %56 = sbr.rel (0) target = $region29
    $region28: #{tpu_custom_call.1} parent=1 // pred_region
      _
    $region29: #{tpu_custom_call.1} parent=1 // pred_fallthru
      _
    // Predicated region
    $region30: #{tpu_custom_call.1} parent=1 // pred_check
      _
    $region31: #{tpu_custom_call.1} parent=1 // pred_check_branch
      %58 = sbr.rel (0) target = $region33
    $region32: #{tpu_custom_call.1} parent=1 // pred_region
      %59 = dma.done [#allocation4], 128
    $region33: #{tpu_custom_call.1} parent=1 // pred_fallthru
      _
    // Predicated region
    $region34: #{tpu_custom_call.1} parent=1 // pred_check
      _
    $region35: #{tpu_custom_call.1} parent=1 // pred_check_branch
      %61 = sbr.rel (0) target = $region37
    $region36: #{tpu_custom_call.1} parent=1 // pred_region
      %62 = dma.done [#allocation6], 512
    $region37: #{tpu_custom_call.1} parent=1 // pred_fallthru
      _
    // Predicated region
    $region38: #{tpu_custom_call.1} parent=1 // pred_check
      _
    $region39: #{tpu_custom_call.1} parent=1 // pred_check_branch
      %64 = sbr.rel (0) target = $region41
    $region40: #{tpu_custom_call.1} parent=1 // pred_region
      %65 = dma.done [#allocation6], 2048
    $region41: #{tpu_custom_call.1} parent=1 // pred_fallthru
      _
    %v66 = vld [vmem:[#allocation3] sm:$0xff]
    %v67 = vld [vmem:[#allocation5] sm:$0xff]
    %v68 = vld [vmem:[#allocation5 + $0x8] sm:$0xff]
    %v69 = vld [vmem:[#allocation5 + $0x10] sm:$0xff]
    %v70 = vld [vmem:[#allocation5 + $0x18] sm:$0xff]
    %v71 = vld [vmem:[%s2] sm:$0x1]
    %v73 = vlaneseq
    %v74 = vshrl.u32 %v73, 7
    %v75 = vsub.s32 0, %v74
    %v76 = vrot.slane %v71, %v75
    %vm78 = vcmask 261120
    %v80 = vsel %vm78, %v66, 0
    %82 = vmatprep.subr.mxu0 0.0
    %83 = vmatpush1.msra.mxu0 %v67
    %84 = vmatprep.subr.mxu0 0.0
    %85 = vmatpush1.msra.mxu0 %v68
    %86 = vmatprep.subr.mxu0 0.0
    %87 = vmatpush1.msra.mxu0 %v69
    %88 = vmatprep.subr.mxu0 0.0
    %89 = vmatpush1.msra.mxu0 %v70
    %90 = vmatprep.subr.mxu0 0.0
    %91 = vmatpush1.msra.mxu0 0.0
    %92 = vmatprep.subr.mxu0 0.0
    %93 = vmatpush1.msra.mxu0 0.0
    %94 = vmatprep.subr.mxu0 0.0
    %95 = vmatpush1.msra.mxu0 0.0
    %96 = vmatprep.subr.mxu0 0.0
    %97 = vmatpush1.msra.mxu0 0.0
    %98 = vmatprep.subr.mxu0 0.0
    %99 = vmatpush1.msra.mxu0 0.0
    %100 = vmatprep.subr.mxu0 0.0
    %101 = vmatpush1.msra.mxu0 0.0
    %102 = vmatprep.subr.mxu0 0.0
    %103 = vmatpush1.msra.mxu0 0.0
    %104 = vmatprep.subr.mxu0 0.0
    %105 = vmatpush1.msra.mxu0 0.0
    %106 = vmatprep.subr.mxu0 0.0
    %107 = vmatpush1.msra.mxu0 0.0
    %108 = vmatprep.subr.mxu0 0.0
    %109 = vmatpush1.msra.mxu0 0.0
    %110 = vmatprep.subr.mxu0 0.0
    %111 = vmatpush1.msra.mxu0 0.0
    %112 = vmatprep.subr.mxu0 0.0
    %113 = vmatpush1.msra.mxu0 0.0
    %114 = vmatprep.subr.mxu0 0.0
    %115 = vmatpush1.msra.mxu0 0.0
    %116 = vmatprep.subr.mxu0 0.0
    %117 = vmatpush1.msra.mxu0 0.0
    %118 = vmatprep.subr.mxu0 0.0
    %119 = vmatpush1.msra.mxu0 0.0
    %120 = vmatprep.subr.mxu0 0.0
    %121 = vmatpush1.msra.mxu0 0.0
    %122 = vmatprep.subr.mxu0 0.0
    %123 = vmatpush1.msra.mxu0 0.0
    %124 = vmatprep.subr.mxu0 0.0
    %125 = vmatpush1.msra.mxu0 0.0
    %126 = vmatprep.subr.mxu0 0.0
    %127 = vmatpush1.msra.mxu0 0.0
    %128 = vmatprep.subr.mxu0 0.0
    %129 = vmatpush1.msra.mxu0 0.0
    %130 = vmatprep.subr.mxu0 0.0
    %131 = vmatpush1.msra.mxu0 0.0
    %132 = vmatprep.subr.mxu0 0.0
    %133 = vmatpush1.msra.mxu0 0.0
    %134 = vmatprep.subr.mxu0 0.0
    %135 = vmatpush1.msra.mxu0 0.0
    %136 = vmatprep.subr.mxu0 0.0
    %137 = vmatpush1.msra.mxu0 0.0
    %138 = vmatprep.subr.mxu0 0.0
    %139 = vmatpush1.msra.mxu0 0.0
    %140 = vmatprep.subr.mxu0 0.0
    %141 = vmatpush1.msra.mxu0 0.0
    %142 = vmatprep.subr.mxu0 0.0
    %143 = vmatpush1.msra.mxu0 0.0
    %144 = vmatprep.subr.mxu0 0.0
    %145 = vmatpush1.msra.mxu0 0.0
    %146 = vmatprep.mubr.f32.mxu0 0.0
    %147 = vmatmul.mubr.f32.gmra.mrb[0].mxu0 %v80
    %v148 = vpop.f32.mrb[0].mxu0
    %v149 = vadd.f32 %v76, %v148
    %v150 = vpop.f32.mrb[0].mxu0
    %151 = vdwg.mxu0
    %v152 = vmax.f32 %v149, 0.0
    %v153 = vld [vmem:[#allocation7] sm:$0xff]
    %v154 = vld [vmem:[#allocation7 + $0x8] sm:$0xff]
    %v155 = vld [vmem:[#allocation7 + $0x10] sm:$0xff]
    %v156 = vld [vmem:[#allocation7 + $0x18] sm:$0xff]
    %v157 = vld [vmem:[#allocation7 + $0x20] sm:$0xff]
    %v158 = vld [vmem:[#allocation7 + $0x28] sm:$0xff]
    %v159 = vld [vmem:[#allocation7 + $0x30] sm:$0xff]
    %v160 = vld [vmem:[#allocation7 + $0x38] sm:$0xff]
    %v161 = vld [vmem:[#allocation7 + $0x40] sm:$0xff]
    %v162 = vld [vmem:[#allocation7 + $0x48] sm:$0xff]
    %v163 = vld [vmem:[#allocation7 + $0x50] sm:$0xff]
    %v164 = vld [vmem:[#allocation7 + $0x58] sm:$0xff]
    %v165 = vld [vmem:[#allocation7 + $0x60] sm:$0xff]
    %v166 = vld [vmem:[#allocation7 + $0x68] sm:$0xff]
    %v167 = vld [vmem:[#allocation7 + $0x70] sm:$0xff]
    %v168 = vld [vmem:[#allocation7 + $0x78] sm:$0xff]
    %v169 = vld [vmem:[%s4] sm:$0x1]
    %v171 = vlaneseq
    %v172 = vshrl.u32 %v171, 7
    %v173 = vsub.s32 0, %v172
    %v174 = vrot.slane %v169, %v173
    %176 = vmatprep.subr.mxu0 0.0
    %177 = vmatpush1.msra.mxu0 %v153
    %178 = vmatprep.subr.mxu0 0.0
    %179 = vmatpush1.msra.mxu0 %v154
    %180 = vmatprep.subr.mxu0 0.0
    %181 = vmatpush1.msra.mxu0 %v155
    %182 = vmatprep.subr.mxu0 0.0
    %183 = vmatpush1.msra.mxu0 %v156
    %184 = vmatprep.subr.mxu0 0.0
    %185 = vmatpush1.msra.mxu0 %v157
    %186 = vmatprep.subr.mxu0 0.0
    %187 = vmatpush1.msra.mxu0 %v158
    %188 = vmatprep.subr.mxu0 0.0
    %189 = vmatpush1.msra.mxu0 %v159
    %190 = vmatprep.subr.mxu0 0.0
    %191 = vmatpush1.msra.mxu0 %v160
    %192 = vmatprep.subr.mxu0 0.0
    %193 = vmatpush1.msra.mxu0 %v161
    %194 = vmatprep.subr.mxu0 0.0
    %195 = vmatpush1.msra.mxu0 %v162
    %196 = vmatprep.subr.mxu0 0.0
    %197 = vmatpush1.msra.mxu0 %v163
    %198 = vmatprep.subr.mxu0 0.0
    %199 = vmatpush1.msra.mxu0 %v164
    %200 = vmatprep.subr.mxu0 0.0
    %201 = vmatpush1.msra.mxu0 %v165
    %202 = vmatprep.subr.mxu0 0.0
    %203 = vmatpush1.msra.mxu0 %v166
    %204 = vmatprep.subr.mxu0 0.0
    %205 = vmatpush1.msra.mxu0 %v167
    %206 = vmatprep.subr.mxu0 0.0
    %207 = vmatpush1.msra.mxu0 %v168
    %208 = vmatprep.subr.mxu0 0.0
    %209 = vmatpush1.msra.mxu0 0.0
    %210 = vmatprep.subr.mxu0 0.0
    %211 = vmatpush1.msra.mxu0 0.0
    %212 = vmatprep.subr.mxu0 0.0
    %213 = vmatpush1.msra.mxu0 0.0
    %214 = vmatprep.subr.mxu0 0.0
    %215 = vmatpush1.msra.mxu0 0.0
    %216 = vmatprep.subr.mxu0 0.0
    %217 = vmatpush1.msra.mxu0 0.0
    %218 = vmatprep.subr.mxu0 0.0
    %219 = vmatpush1.msra.mxu0 0.0
    %220 = vmatprep.subr.mxu0 0.0
    %221 = vmatpush1.msra.mxu0 0.0
    %222 = vmatprep.subr.mxu0 0.0
    %223 = vmatpush1.msra.mxu0 0.0
    %224 = vmatprep.subr.mxu0 0.0
    %225 = vmatpush1.msra.mxu0 0.0
    %226 = vmatprep.subr.mxu0 0.0
    %227 = vmatpush1.msra.mxu0 0.0
    %228 = vmatprep.subr.mxu0 0.0
    %229 = vmatpush1.msra.mxu0 0.0
    %230 = vmatprep.subr.mxu0 0.0
    %231 = vmatpush1.msra.mxu0 0.0
    %232 = vmatprep.subr.mxu0 0.0
    %233 = vmatpush1.msra.mxu0 0.0
    %234 = vmatprep.subr.mxu0 0.0
    %235 = vmatpush1.msra.mxu0 0.0
    %236 = vmatprep.subr.mxu0 0.0
    %237 = vmatpush1.msra.mxu0 0.0
    %238 = vmatprep.subr.mxu0 0.0
    %239 = vmatpush1.msra.mxu0 0.0
    %240 = vmatprep.mubr.f32.mxu0 0.0
    %241 = vmatmul.mubr.f32.gmra.mrb[0].mxu0 %v152
    %v242 = vpop.f32.mrb[0].mxu0
    %v243 = vadd.f32 %v174, %v242
    %v244 = vpop.f32.mrb[0].mxu0
    %245 = vdwg.mxu0
    %v246 = vmax.f32 %v243, 0.0
    %v247 = vld [vmem:[%s5] sm:$0x1]
    %v249 = vlaneseq
    %v250 = vshrl.u32 %v249, 7
    %v251 = vsub.s32 0, %v250
    %v252 = vrot.slane %v247, %v251
    %v254 = vmul.f32 %v246, %v252
    %255 = vadd.xlane.f32.xlu0 %v254
    %v256 = vpop.xlane.xlu0 %255
    %s257 = sld [smem:[#allocation2]]
    %v258 = vstv %s257
    %v259 = vadd.f32 %v256, %v258
    %vm260 = vcmask 7168
    %261 = vst.msk [vmem:[%s7] sm:$0xff] %vm260, %v259
    // Predicated region
    $region42: #{tpu_custom_call.1} parent=1 // pred_check
      _
    $region43: #{tpu_custom_call.1} parent=1 // pred_check_branch
      %263 = sbr.rel (0) target = $region45
    $region44: #{tpu_custom_call.1} parent=1 // pred_region
      _
    $region45: #{tpu_custom_call.1} parent=1 // pred_fallthru
      _
    // Predicated region
    $region46: #{tpu_custom_call.1} parent=1 // pred_check
      _
    $region47: #{tpu_custom_call.1} parent=1 // pred_check_branch
      %265 = sbr.rel (0) target = $region49
    $region48: #{tpu_custom_call.1} parent=1 // pred_region
      _
    $region49: #{tpu_custom_call.1} parent=1 // pred_fallthru
      _
    %266 = vsyncpa [#allocation4], 1
    %267 = vsyncpa [#allocation6], 1

</llo_original>
